<compile_context>
chip_gen: v7x
topology: tpu7x:2x2x1
jax: 0.10.0
libtpu: 0.0.40
codegen_flags: <defaults>
</compile_context>

<pallas_src>
import functools

import jax
import jax.numpy as jnp
from jax.experimental import pallas as pl
from jax.experimental.pallas import tpu as pltpu


_GRAY_COEFFS = (65.738 / 256.0, 129.057 / 256.0, 25.064 / 256.0)


def _weighted_gray(read, coeffs):
    """coeffs[0]*ch0 + coeffs[1]*ch1 + ... accumulated channel-by-channel (f32)."""
    if len(coeffs) == 1:
        return read(0)                       # identity for 1-channel input
    g = coeffs[0] * read(0)
    for c in range(1, len(coeffs)):
        g = g + coeffs[c] * read(c)
    return g


def _grad_kernel(x_ref, *rest, coeffs, H, W, tile_h, nh,
                 use_row_roll, use_col_roll):
    # x_ref : (1, C, tile_h, W) main input tile (auto-pipelined into VMEM).
    # nh > 1 : rest = (x_hbm, o_ref, hbuf, carry, sem)
    #   x_hbm : full (N, C, H, W) input left in HBM (bottom-halo row only)
    #   hbuf  : (C, 1, W) VMEM landing buffer for the bottom-halo row
    #   carry : (1, W) f32 persistent scratch = gray of previous tile's last row
    # nh == 1: rest = (o_ref,)
    multi = nh > 1
    if multi:
        x_hbm, o_ref, hbuf, carry, sem = rest
    else:
        (o_ref,) = rest

    f32 = jnp.float32
    n = pl.program_id(0)
    h = pl.program_id(1)

    if multi:
        # Row just below this tile (clamped on the last tile; zeroed below).
        row_bot = jnp.minimum((h + 1) * tile_h, H - 1)
        bot_cp = pltpu.make_async_copy(
            x_hbm.at[n, :, pl.ds(row_bot, 1), :], hbuf, sem.at[0])
        bot_cp.start()

        @pl.when(h == 0)
        def _():
            # Top image border -> the carried "row above" is zero padding.
            carry[...] = jnp.zeros_like(carry)

    # Gray conversion of the main tile in f32 (VPU work hides the halo DMA).
    g = _weighted_gray(lambda c: x_ref[0, c].astype(f32), coeffs)    # (tile_h, W)

    if multi:
        top = carry[...]                               # gray row above this tile
        carry[...] = g[tile_h - 1:tile_h, :]           # hand last row to next tile
        bot_cp.wait()
        bot = _weighted_gray(lambda c: hbuf[c].astype(f32), coeffs)  # (1, W)
        # Below the image (last tile) the neighbour row is zero padding.
        bot = bot * (h < nh - 1).astype(f32)
    else:
        top = jnp.zeros((1, W), f32)
        bot = jnp.zeros((1, W), f32)

    # Vertical neighbours: up[r] = gray[r+1], dn[r] = gray[r-1] (zeros outside).
    if use_row_roll:
        row = jax.lax.broadcasted_iota(jnp.int32, (tile_h, 1), 0)
        up = jnp.where(row == tile_h - 1, bot, pltpu.roll(g, tile_h - 1, 0))
        dn = jnp.where(row == 0, top, pltpu.roll(g, 1, 0))
    else:
        up = jnp.concatenate([g[1:], bot], axis=0)
        dn = jnp.concatenate([top, g[:-1]], axis=0)

    # Horizontal neighbours: rt[:, j] = gray[:, j+1], lf[:, j] = gray[:, j-1].
    if use_col_roll:
        col = jax.lax.broadcasted_iota(jnp.int32, (1, W), 1)
        rt = pltpu.roll(g, W - 1, 1) * (col < W - 1).astype(f32)
        lf = pltpu.roll(g, 1, 1) * (col > 0).astype(f32)
    else:
        zcol = jnp.zeros((tile_h, 1), f32)
        rt = jnp.concatenate([g[:, 1:], zcol], axis=1)
        lf = jnp.concatenate([zcol, g[:, :-1]], axis=1)

    x_v = up - dn   # == conv2d(gray, [[0,-1,0],[0,0,0],[0,1,0]], padding=1)
    x_h = rt - lf   # == conv2d(gray, [[0,0,0],[-1,0,1],[0,0,0]], padding=1)
    res = jnp.sqrt(x_v * x_v + x_h * x_h + 1e-6)
    o_ref[...] = res.astype(o_ref.dtype)[None, None, :, :]


def _vmem_capacity_bytes():
    try:
        return int(pltpu.get_tpu_info().vmem_capacity_bytes)
    except Exception:
        return 64 * 1024 * 1024              # conservative (v7x-sized) default


def _choose_tile_h(H, C, W, itemsize, align, budget_bytes):
    """Largest sublane-aligned exact divisor of H whose (input+output) block
    fits the per-block VMEM budget; otherwise a single tile."""
    per_row = max(1, (C + 1) * W * itemsize)
    cap = max(align, budget_bytes // per_row)
    if H <= cap:
        return H
    start = max(align, (cap // align) * align)
    for cand in range(start, align - 1, -align):
        if H % cand == 0:
            return cand
    # TODO(synk): H has no sublane-aligned divisor that fits the VMEM budget;
    # fall back to a single oversized tile instead of a ragged last tile.
    return H


def _snap_tile_h(H, requested, align):
    """Snap a user-supplied tile height to an aligned exact divisor of H."""
    req = max(1, min(int(requested), H))
    if req >= H:
        return H
    start = max(align, (req // align) * align)
    for cand in range(start, align - 1, -align):
        if H % cand == 0:
            return cand
    return H


def grad_layer(x, tile_h=None):
    """Pallas TPU implementation of GradLayer.forward.

    x: (N, C, H, W) with C in {1, 3}. Returns (N, 1, H, W) gradient magnitude.
    """
    N, C, H, W = x.shape
    if C == 3:
        coeffs = _GRAY_COEFFS
    elif C == 1:
        coeffs = (1.0,)
    else:
        raise ValueError("GradLayer expects 1 or 3 input channels")

    itemsize = jnp.dtype(x.dtype).itemsize
    # Packed sublanes per vreg row for the input dtype: 8 f32, 16 bf16, 32 int8.
    align = max(8, (8 * 4) // itemsize)

    vmem_cap = _vmem_capacity_bytes()
    # ~12 MiB blocks on 128 MiB-VMEM chips (v5e/v6e), ~5 MiB on 64 MiB (v7x).
    budget = 12 * 1024 * 1024 if vmem_cap >= 96 * 1024 * 1024 else 5 * 1024 * 1024

    if tile_h is None:
        tile_h = _choose_tile_h(H, C, W, itemsize, align, budget)
    else:
        tile_h = _snap_tile_h(H, tile_h, align)
    if H % tile_h == 0:
        nh = H // tile_h
    else:                                   # defensive: never allow ragged tiles
        nh, tile_h = 1, H

    use_row_roll = (tile_h % 8 == 0)        # gray value is f32 -> 8-row sublanes
    use_col_roll = (W % 128 == 0)

    kernel = functools.partial(
        _grad_kernel, coeffs=coeffs, H=H, W=W, tile_h=tile_h, nh=nh,
        use_row_roll=use_row_roll, use_col_roll=use_col_roll)

    in_specs = [pl.BlockSpec((1, C, tile_h, W), lambda n, h: (n, 0, h, 0))]
    scratch_shapes = []
    args = (x,)
    if nh > 1:
        # Untiled HBM view of the same input, used only for the bottom halo row.
        in_specs.append(pl.BlockSpec(memory_space=pl.ANY))
        scratch_shapes = [
            pltpu.VMEM((C, 1, W), x.dtype),       # bottom-halo landing buffer
            pltpu.VMEM((1, W), jnp.float32),      # carried gray row (prev tile)
            pltpu.SemaphoreType.DMA((1,)),
        ]
        args = (x, x)

    block_bytes = (C + 1) * tile_h * W * itemsize
    vmem_limit = max(32 * 1024 * 1024, 4 * block_bytes)
    vmem_limit = int(min(vmem_limit, vmem_cap - 4 * 1024 * 1024))

    cost = pl.CostEstimate(
        flops=int(N * H * W * (2 * C + 10)),
        transcendentals=int(N * H * W),
        bytes_accessed=int(N * (C + 1) * H * W * itemsize),
    )

    return pl.pallas_call(
        kernel,
        out_shape=jax.ShapeDtypeStruct((N, 1, H, W), x.dtype),
        grid=(N, nh),
        in_specs=in_specs,
        out_specs=pl.BlockSpec((1, 1, tile_h, W), lambda n, h: (n, 0, h, 0)),
        scratch_shapes=scratch_shapes,
        compiler_params=pltpu.CompilerParams(
            # h must stay sequential for the carried-row scratch; N is sharded
            # across TensorCores on megacore parts.
            dimension_semantics=("parallel", "arbitrary"),
            vmem_limit_bytes=vmem_limit,
        ),
        cost_estimate=cost,
    )(*args)


def grad_layer_ref(x):
    """Pure-JAX reference (mirrors the PyTorch semantics) for validation."""
    N, C, H, W = x.shape
    if C == 3:
        convert = jnp.array([65.738, 129.057, 25.064],
                            x.dtype).reshape(1, 3, 1, 1) / 256.0
        x = jnp.sum(x * convert, axis=1, keepdims=True)
    xp = jnp.pad(x, ((0, 0), (0, 0), (1, 1), (1, 1)))
    x_v = xp[:, :, 2:, 1:-1] - xp[:, :, :-2, 1:-1]
    x_h = xp[:, :, 1:-1, 2:] - xp[:, :, 1:-1, :-2]
    return jnp.sqrt(x_v ** 2 + x_h ** 2 + 1e-6)


if __name__ == "__main__":
    key = jax.random.PRNGKey(0)
    k1, k2, k3, k4, k5 = jax.random.split(key, 5)

    # 3-channel, single H tile, row-roll + lane-roll fast paths.
    x_rgb = jax.random.uniform(k1, (2, 3, 16, 128), dtype=jnp.float32)
    out_rgb = jax.block_until_ready(grad_layer(x_rgb))
    assert out_rgb.shape == (2, 1, 16, 128)
    assert jnp.allclose(out_rgb, grad_layer_ref(x_rgb), atol=1e-5, rtol=1e-5)

    # 1-channel, narrow width: row-roll + column concat fallback.
    x_gray = jax.random.uniform(k2, (2, 1, 16, 16), dtype=jnp.float32)
    out_gray = jax.block_until_ready(grad_layer(x_gray))
    assert out_gray.shape == (2, 1, 16, 16)
    assert jnp.allclose(out_gray, grad_layer_ref(x_gray), atol=1e-5, rtol=1e-5)

    # Unaligned H and narrow width: full concat fallback, single tile.
    x_small = jax.random.uniform(k3, (1, 1, 12, 16), dtype=jnp.float32)
    out_small = jax.block_until_ready(grad_layer(x_small))
    assert out_small.shape == (1, 1, 12, 16)
    assert jnp.allclose(out_small, grad_layer_ref(x_small), atol=1e-5, rtol=1e-5)

    # H-tiled path: bottom-halo DMA + carried top row + rolls (forced small tile).
    x_big = jax.random.uniform(k4, (1, 3, 40, 128), dtype=jnp.float32)
    out_big = jax.block_until_ready(grad_layer(x_big, tile_h=8))
    assert out_big.shape == (1, 1, 40, 128)
    assert jnp.allclose(out_big, grad_layer_ref(x_big), atol=1e-5, rtol=1e-5)

    # bf16 input, H-tiled: internal f32 compute, bf16 load/store.
    x_bf16 = jax.random.uniform(k5, (1, 3, 32, 128), dtype=jnp.float32
                                ).astype(jnp.bfloat16)
    out_bf16 = jax.block_until_ready(grad_layer(x_bf16, tile_h=16))
    ref_bf16 = grad_layer_ref(x_bf16.astype(jnp.float32))
    assert out_bf16.shape == (1, 1, 32, 128)
    assert jnp.allclose(out_bf16.astype(jnp.float32), ref_bf16,
                        atol=2e-2, rtol=2e-2)

    print("KERNEL_OK")
</pallas_src>

<mosaic_0001>
module attributes {stable_mosaic.version = 11 : i64} {
  func.func @_grad_kernel(%arg0: i32, %arg1: i32, %arg2: memref<1x3x16x128xf32, #tpu.memory_space<vmem>>, %arg3: memref<1x1x16x128xf32, #tpu.memory_space<vmem>>) attributes {dimension_semantics = [#tpu.dimension_semantics<parallel>, #tpu.dimension_semantics<arbitrary>], iteration_bounds = array<i64: 2, 1>, scalar_prefetch = 0 : i64, scratch_operands = 0 : i64, tpu.core_type = #tpu.core_type<tc>, window_params = [{transform_indices = @transform_0, window_bounds = array<i64: 1, 3, 16, 128>}, {transform_indices = @transform_1, window_bounds = array<i64: 1, 1, 16, 128>}]} {
    %c0 = arith.constant 0 : index
    %c0_0 = arith.constant 0 : index
    %c0_1 = arith.constant 0 : index
    %c0_2 = arith.constant 0 : index
    %0 = vector.load %arg2[%c0, %c0_0, %c0_1, %c0_2] : memref<1x3x16x128xf32, #tpu.memory_space<vmem>>, vector<1x1x16x128xf32>
    %1 = vector.shape_cast %0 : vector<1x1x16x128xf32> to vector<16x128xf32>
    %cst = arith.constant 0.256789058 : f32
    %2 = vector.broadcast %cst : f32 to vector<16x128xf32>
    %3 = arith.mulf %2, %1 : vector<16x128xf32>
    %c0_3 = arith.constant 0 : index
    %c1 = arith.constant 1 : index
    %c0_4 = arith.constant 0 : index
    %c0_5 = arith.constant 0 : index
    %4 = vector.load %arg2[%c0_3, %c1, %c0_4, %c0_5] : memref<1x3x16x128xf32, #tpu.memory_space<vmem>>, vector<1x1x16x128xf32>
    %5 = vector.shape_cast %4 : vector<1x1x16x128xf32> to vector<16x128xf32>
    %cst_6 = arith.constant 0.504128933 : f32
    %6 = vector.broadcast %cst_6 : f32 to vector<16x128xf32>
    %7 = arith.mulf %6, %5 : vector<16x128xf32>
    %8 = arith.addf %3, %7 : vector<16x128xf32>
    %c0_7 = arith.constant 0 : index
    %c2 = arith.constant 2 : index
    %c0_8 = arith.constant 0 : index
    %c0_9 = arith.constant 0 : index
    %9 = vector.load %arg2[%c0_7, %c2, %c0_8, %c0_9] : memref<1x3x16x128xf32, #tpu.memory_space<vmem>>, vector<1x1x16x128xf32>
    %10 = vector.shape_cast %9 : vector<1x1x16x128xf32> to vector<16x128xf32>
    %cst_10 = arith.constant 0.0979062467 : f32
    %11 = vector.broadcast %cst_10 : f32 to vector<16x128xf32>
    %12 = arith.mulf %11, %10 : vector<16x128xf32>
    %13 = arith.addf %8, %12 : vector<16x128xf32>
    %cst_11 = arith.constant 0.000000e+00 : f32
    %14 = vector.broadcast %cst_11 : f32 to vector<1x128xf32>
    %cst_12 = arith.constant 0.000000e+00 : f32
    %15 = vector.broadcast %cst_12 : f32 to vector<1x128xf32>
    %16 = tpu.iota {dimensions = array<i32: 0>} : vector<16x1xi32>
    %c15_i32 = arith.constant 15 : i32
    %17 = vector.broadcast %c15_i32 : i32 to vector<16x1xi32>
    %18 = arith.cmpi eq, %16, %17 : vector<16x1xi32>
    %c15_i32_13 = arith.constant 15 : i32
    %19 = tpu.dynamic_rotate %13 by %c15_i32_13 dim 0 : vector<16x128xf32>, i32 -> vector<16x128xf32>
    %20 = vector.shape_cast %18 : vector<16x1xi1> to vector<16x1xi1>
    %21 = vector.broadcast %20 : vector<16x1xi1> to vector<16x128xi1>
    %22 = vector.shape_cast %15 : vector<1x128xf32> to vector<1x128xf32>
    %23 = vector.broadcast %22 : vector<1x128xf32> to vector<16x128xf32>
    %24 = arith.select %21, %23, %19 : vector<16x128xi1>, vector<16x128xf32>
    %c0_i32 = arith.constant 0 : i32
    %25 = vector.broadcast %c0_i32 : i32 to vector<16x1xi32>
    %26 = arith.cmpi eq, %16, %25 : vector<16x1xi32>
    %c1_i32 = arith.constant 1 : i32
    %27 = tpu.dynamic_rotate %13 by %c1_i32 dim 0 : vector<16x128xf32>, i32 -> vector<16x128xf32>
    %28 = vector.shape_cast %26 : vector<16x1xi1> to vector<16x1xi1>
    %29 = vector.broadcast %28 : vector<16x1xi1> to vector<16x128xi1>
    %30 = vector.shape_cast %14 : vector<1x128xf32> to vector<1x128xf32>
    %31 = vector.broadcast %30 : vector<1x128xf32> to vector<16x128xf32>
    %32 = arith.select %29, %31, %27 : vector<16x128xi1>, vector<16x128xf32>
    %33 = tpu.iota {dimensions = array<i32: 1>} : vector<1x128xi32>
    %c127_i32 = arith.constant 127 : i32
    %34 = tpu.dynamic_rotate %13 by %c127_i32 dim 1 : vector<16x128xf32>, i32 -> vector<16x128xf32>
    %c127_i32_14 = arith.constant 127 : i32
    %35 = vector.broadcast %c127_i32_14 : i32 to vector<1x128xi32>
    %36 = arith.cmpi slt, %33, %35 : vector<1x128xi32>
    %37 = arith.extui %36 : vector<1x128xi1> to vector<1x128xi32>
    %38 = arith.sitofp %37 : vector<1x128xi32> to vector<1x128xf32>
    %39 = vector.broadcast %38 : vector<1x128xf32> to vector<16x128xf32>
    %40 = arith.mulf %34, %39 : vector<16x128xf32>
    %c1_i32_15 = arith.constant 1 : i32
    %41 = tpu.dynamic_rotate %13 by %c1_i32_15 dim 1 : vector<16x128xf32>, i32 -> vector<16x128xf32>
    %c0_i32_16 = arith.constant 0 : i32
    %42 = vector.broadcast %c0_i32_16 : i32 to vector<1x128xi32>
    %43 = arith.cmpi sgt, %33, %42 : vector<1x128xi32>
    %44 = arith.extui %43 : vector<1x128xi1> to vector<1x128xi32>
    %45 = arith.sitofp %44 : vector<1x128xi32> to vector<1x128xf32>
    %46 = vector.broadcast %45 : vector<1x128xf32> to vector<16x128xf32>
    %47 = arith.mulf %41, %46 : vector<16x128xf32>
    %48 = arith.subf %24, %32 : vector<16x128xf32>
    %49 = arith.subf %40, %47 : vector<16x128xf32>
    %50 = arith.mulf %48, %48 : vector<16x128xf32>
    %51 = arith.mulf %49, %49 : vector<16x128xf32>
    %52 = arith.addf %50, %51 : vector<16x128xf32>
    %cst_17 = arith.constant 9.99999997E-7 : f32
    %53 = vector.broadcast %cst_17 : f32 to vector<16x128xf32>
    %54 = arith.addf %52, %53 : vector<16x128xf32>
    %55 = math.sqrt %54 : vector<16x128xf32>
    %56 = vector.shape_cast %55 : vector<16x128xf32> to vector<1x1x16x128xf32>
    %c0_18 = arith.constant 0 : index
    %c0_19 = arith.constant 0 : index
    %c0_20 = arith.constant 0 : index
    %c0_21 = arith.constant 0 : index
    %57 = vector.load %arg3[%c0_18, %c0_19, %c0_20, %c0_21] : memref<1x1x16x128xf32, #tpu.memory_space<vmem>>, vector<1x1x16x128xf32>
    tpu.vector_store %arg3[%c0_18, %c0_19, %c0_20, %c0_21], %56 {strides = array<i32>} : memref<1x1x16x128xf32, #tpu.memory_space<vmem>>, vector<1x1x16x128xf32>,
    return
  }
  func.func @transform_0(%arg0: i32, %arg1: i32) -> (i32, i32, i32, i32) {
    %c0_i32 = arith.constant 0 : i32
    %c0_i32_0 = arith.constant 0 : i32
    %c0_i32_1 = arith.constant 0 : i32
    return %arg0, %c0_i32, %arg1, %c0_i32_0 : i32, i32, i32, i32
  }
  func.func @transform_1(%arg0: i32, %arg1: i32) -> (i32, i32, i32, i32) {
    %c0_i32 = arith.constant 0 : i32
    %c0_i32_0 = arith.constant 0 : i32
    %c0_i32_1 = arith.constant 0 : i32
    return %arg0, %c0_i32, %arg1, %c0_i32_0 : i32, i32, i32, i32
  }
}

</mosaic_0001>

<llo_original>
// kernel: tpu_custom_call.1
$region0: #{tpu_custom_call.1}
  #allocation0 [shape = 'u32[]', space=smem, size = 0x4, offset = 0x4, fixed_abs, tag = 'smem constant byte address 0x4 - core index']
  #allocation1 [shape = 'u32[144,128]{1,0:T(1,128)}', space=vmem, size = 0x12000, scoped, tag = 'internal scratch']
  %s0 = inlined_call_operand.hbm [shape: f32[2,3,16,128], index: 0, kind: input, shape index: {}]
  %s1 = inlined_call_operand.hbm [shape: f32[2,1,16,128], index: 1, kind: output, shape index: {}]
  %s2 = sld [smem:[#allocation0]]
  $region41: #{tpu_custom_call.1} parent=0
    _
  %s4 = ssub.s32 1, %s2
  %s5 = scalar_select 0, %s4, %s2
  $region1: #{tpu_custom_call.1} parent=0
    #allocation2 [shape = 'u8[49152]{0}', space=vmem, size = 0xc000, scoped, tag = 'input window, operand 0']
    #allocation3 [shape = 's32[2]{0}', space=sflag, size = 0x8, scoped, tag = 'scoped memory for tpu_custom_call.1']
    #allocation4 [shape = 's32[2]{0}', space=sflag, size = 0x8, scoped, tag = 'scoped memory for tpu_custom_call.1']
    #allocation5 [shape = 'u8[16384]{0}', space=vmem, size = 0x4000, scoped, tag = 'output window, operand 0']
    %6 = vsyncpa [#allocation3], 0
    %s7 = scalar_lea.sflag [#allocation3], 1
    %8 = vsyncpa %s7, 0
    %9 = vsyncpa [#allocation4], 0
    %s10 = scalar_lea.sflag [#allocation4], 1
    %11 = vsyncpa %s10, 0
    loop: start=0, step=1, limit=4
    $region2: #{tpu_custom_call.1} parent=1 // loop_pre_header
      _
    $region3: #{tpu_custom_call.1} parent=1 // loop_header
      %s13 = sphi 0, %s17
      %p14 = scmp.ge.s32.totalorder %s13, 4
      %s20 = sphi 0, %s32
      %s21 = sphi 0, %s28
      %s22 = sphi 0, %s20
      %s23 = sphi 0, %s21
      %s24 = sphi 0, %s22
      %s25 = sphi 0, %s23
      %s37 = sphi 0, %s39
      %s40 = sphi 0, %s37
      %s41 = sphi 0, %s40
      %s57 = sphi 0, %s41
      %s65 = sphi 0, %s67
      %s68 = sphi 0, %s65
      %s69 = sphi 0, %s68
      %s85 = sphi 0, %s69
    $region4: #{tpu_custom_call.1} parent=1 // loop_header_branch
      %16 = sbr.rel (%p14) target = $region8
    $region5: #{tpu_custom_call.1} parent=1 // loop_body
      %s18 = ssub.s32 %s13, 1
      %s19 = ssub.s32 %s13, 2
      %s26 = sadd.s32 1, %s21
      %p27 = scmp.ge.s32.totalorder %s26, 1
      %s28 = scalar_select %p27, 0, %s26
      %s29 = sadd.s32 1, %s20
      %s30 = scalar_select %p27, %s29, %s20
      %p31 = scmp.ge.s32.totalorder %s30, 2
      %s32 = scalar_select %p31, 0, %s30
      %s33 = ssub.s32 %s20, %s32
      %s34 = ssub.s32 %s21, %s28
      %s35 = sor.u32 %s33, %s34
      %p36 = scmp.eq.s32.totalorder %s35, 0
      %s38 = sadd.s32 %s37, 1
      %s39 = scalar_select %p36, %s37, %s38
      %p42 = pneg %p36
      %p43 = scmp.eq.s32.totalorder %s13, 1
      %p44 = por %p42, %p43
      %p45 = scmp.ne.s32.totalorder %s37, %s40
      %p46 = scmp.eq.s32.totalorder %s13, 0
      %p47 = por %p45, %p46
      %p48 = scmp.ne.s32.totalorder %s37, %s40
      %p49 = scmp.eq.s32.totalorder %s18, 1
      %p50 = por %p48, %p49
      %p51 = scmp.ne.s32.totalorder %s40, %s41
      %p52 = scmp.eq.s32.totalorder %s18, 0
      %p53 = por %p51, %p52
      %p54 = scmp.ne.s32.totalorder %s40, %s41
      %p55 = scmp.eq.s32.totalorder %s19, 1
      %p56 = por %p54, %p55
      %p58 = scmp.ne.s32.totalorder %s41, %s57
      %p59 = scmp.eq.s32.totalorder %s19, 0
      %p60 = por %p58, %p59
      %s61 = ssub.s32 %s20, %s32
      %s62 = ssub.s32 %s21, %s28
      %s63 = sor.u32 %s61, %s62
      %p64 = scmp.eq.s32.totalorder %s63, 0
      %s66 = sadd.s32 %s65, 1
      %s67 = scalar_select %p64, %s65, %s66
      %p70 = pneg %p64
      %p71 = scmp.eq.s32.totalorder %s13, 1
      %p72 = por %p70, %p71
      %p73 = scmp.ne.s32.totalorder %s65, %s68
      %p74 = scmp.eq.s32.totalorder %s13, 0
      %p75 = por %p73, %p74
      %p76 = scmp.ne.s32.totalorder %s65, %s68
      %p77 = scmp.eq.s32.totalorder %s18, 1
      %p78 = por %p76, %p77
      %p79 = scmp.ne.s32.totalorder %s68, %s69
      %p80 = scmp.eq.s32.totalorder %s18, 0
      %p81 = por %p79, %p80
      %p82 = scmp.ne.s32.totalorder %s68, %s69
      %p83 = scmp.eq.s32.totalorder %s19, 1
      %p84 = por %p82, %p83
      %p86 = scmp.ne.s32.totalorder %s69, %s85
      %p87 = scmp.eq.s32.totalorder %s19, 0
      %p88 = por %p86, %p87
      %p89 = scmp.le.s32.totalorder 1, %s13
      %p90 = scmp.lt.s32.totalorder %s13, 3
      %p91 = pnand %p89, %p90
      %p92 = pneg %p91
      // Predicated region
      $region9: #{tpu_custom_call.1} parent=5 // pred_check
        _
      $region10: #{tpu_custom_call.1} parent=5 // pred_check_branch
        %94 = sbr.rel (%p91) target = $region12
      $region11: #{tpu_custom_call.1} parent=5 // pred_region
        %s95 = ssub.s32 %s13, 1
      $region12: #{tpu_custom_call.1} parent=5 // pred_fallthru
        _
      %p96 = scmp.lt.s32.totalorder %s13, 2
      // Predicated region
      $region13: #{tpu_custom_call.1} parent=5 // pred_check
        %p97 = pneg %p96
      $region14: #{tpu_custom_call.1} parent=5 // pred_check_branch
        %99 = sbr.rel (%p97) target = $region16
      $region15: #{tpu_custom_call.1} parent=5 // pred_region
        // Predicated region
        $region17: #{tpu_custom_call.1} parent=15 // pred_check
          %p100 = pneg %p47
        $region18: #{tpu_custom_call.1} parent=15 // pred_check_branch
          %102 = sbr.rel (%p100) target = $region20
        $region19: #{tpu_custom_call.1} parent=15 // pred_region
          %s103 = sand.u32 %s37, 1
          %s104 = scalar_lea.sflag [#allocation3], %s103
          %s105 = sand.u32 %s37, 1
          %s106 = smul.addr %s105, 48
          %s107 = scalar_lea.vmem [#allocation2], %s106
          %s108 = smul.u32 2, %s21
          %s110 = ssub.s32 768, 768
          %111 = vsyncadd %s104, %s110
          %s112 = smul.addr %s20, 6
          %s113 = sadd.s32 %s108, %s112
          %s114 = smul.addr %s113, 128
          %s115 = scalar_lea.hbm %s0, %s114
          %s116 = sshll.u32 %s107, 4
          %s117 = int_to_ptr.vmem [resolvable:$true] %s116
          %122 = dma.hbm_to_vmem [thread:$0]  %s115, 768, %s117, %s104, 128, 128, 8
        $region20: #{tpu_custom_call.1} parent=15 // pred_fallthru
          _
      $region16: #{tpu_custom_call.1} parent=5 // pred_fallthru
        _
      %p123 = scmp.le.s32.totalorder 1, %s13
      %p124 = scmp.lt.s32.totalorder %s13, 3
      %p125 = pnand %p123, %p124
      %p126 = pneg %p125
      // Predicated region
      $region21: #{tpu_custom_call.1} parent=5 // pred_check
        _
      $region22: #{tpu_custom_call.1} parent=5 // pred_check_branch
        %128 = sbr.rel (%p125) target = $region24
      $region23: #{tpu_custom_call.1} parent=5 // pred_region
        %s129 = ssub.s32 %s13, 1
        %s130 = sand.u32 %s40, 1
        %s131 = scalar_lea.sflag [#allocation3], %s130
        %s132 = sand.u32 %s40, 1
        %s133 = smul.addr %s132, 48
        %s134 = scalar_lea.vmem [#allocation2], %s133
        // Predicated region
        $region25: #{tpu_custom_call.1} parent=23 // pred_check
          %p135 = pneg %p53
        $region26: #{tpu_custom_call.1} parent=23 // pred_check_branch
          %137 = sbr.rel (%p135) target = $region28
        $region27: #{tpu_custom_call.1} parent=23 // pred_region
          %138 = dma.done %s131, 768
        $region28: #{tpu_custom_call.1} parent=23 // pred_fallthru
          _
        %s139 = sand.u32 %s40, 1
        %s140 = scalar_lea.sflag [#allocation3], %s139
        %s141 = sand.u32 %s40, 1
        %s142 = smul.addr %s141, 48
        %s143 = scalar_lea.vmem [#allocation2], %s142
        %p144 = pneg %p53
        %p145 = pneg %p50
        %p146 = pneg %p81
        %p147 = pneg %p78
        %s148 = sand.u32 %s68, 1
        %s149 = scalar_lea.sflag [#allocation4], %s148
        %s150 = sand.u32 %s68, 1
        %s151 = smul.addr %s150, 16
        %s152 = scalar_lea.vmem [#allocation5], %s151
        %s153 = smul.u32 2, %s23
        %s154 = smul.u32 2, %s23
        %v155 = vld [vmem:[%s134] sm:$0xff]
        %v156 = vld [vmem:[%s134 + $0x8] sm:$0xff]
        %v157 = vmul.f32 %v155, 0.25678906
        %v158 = vmul.f32 %v156, 0.25678906
        %s159 = scalar_lea.vmem %s134, 16 [#allocation2]
        %v160 = vld [vmem:[%s159] sm:$0xff]
        %v161 = vld [vmem:[%s159 + $0x8] sm:$0xff]
        %v162 = vmul.f32 %v160, 0.50412893
        %v163 = vmul.f32 %v161, 0.50412893
        %v164 = vadd.f32 %v157, %v162
        %v165 = vadd.f32 %v158, %v163
        %s166 = scalar_lea.vmem %s134, 32 [#allocation2]
        %v167 = vld [vmem:[%s166] sm:$0xff]
        %v168 = vld [vmem:[%s166 + $0x8] sm:$0xff]
        %v169 = vmul.f32 %v167, 0.09790625
        %v170 = vmul.f32 %v168, 0.09790625
        %v171 = vadd.f32 %v164, %v169
        %v172 = vadd.f32 %v165, %v170
        %v173 = vlaneseq
        %v174 = vshrl.u32 %v173, 7
        %v175 = vadd.s32 %v174, 8
        %vm176 = vcmp.eq.s32.totalorder %v174, 15
        %vm177 = vcmp.eq.s32.totalorder %v175, 15
        %v178 = vrot.slane %v171, 1
        %v179 = vrot.slane %v172, 1
        %vm180 = vcmp.lt.s32.totalorder %v174, 7
        %v181 = vsel %vm180, %v178, %v179
        %v182 = vsel %vm180, %v179, %v178
        %v183 = vsel %vm176, 1, 0
        %v184 = vsel %vm177, 1, 0
        %vm185 = vcmp.eq.s32.totalorder %v183, 1
        %vm186 = vcmp.eq.s32.totalorder %v184, 1
        %v187 = vsel %vm185, 0.0, %v181
        %v188 = vsel %vm186, 0.0, %v182
        %vm189 = vcmp.eq.s32.totalorder %v174, 0
        %vm190 = vcmp.eq.s32.totalorder %v175, 0
        %v191 = vrot.slane %v171, 7
        %v192 = vrot.slane %v172, 7
        %vm193 = vcmp.lt.s32.totalorder %v174, 1
        %v194 = vsel %vm193, %v191, %v192
        %v195 = vsel %vm193, %v192, %v191
        %v196 = vsel %vm189, 1, 0
        %v197 = vsel %vm190, 1, 0
        %vm198 = vcmp.eq.s32.totalorder %v196, 1
        %vm199 = vcmp.eq.s32.totalorder %v197, 1
        %v200 = vsel %vm198, 0.0, %v195
        %v201 = vsel %vm199, 0.0, %v194
        %v202 = vlaneseq
        %v203 = vand.u32 %v202, 127
        %204 = vrot.lane.b32.xlu0 %v171, 127
        %v205 = vpop.permute.xlu0 %204
        %206 = vrot.lane.b32.xlu0 %v172, 127
        %v207 = vpop.permute.xlu0 %206
        %vm208 = vcmp.lt.s32.totalorder %v203, 127
        %v209 = vsel %vm208, 1, 0
        %v210 = vcvt.s32.f32 %v209
        %v211 = vmul.f32 %v205, %v210
        %v212 = vmul.f32 %v207, %v210
        %213 = vrot.lane.b32.xlu0 %v171, 1
        %v214 = vpop.permute.xlu0 %213
        %215 = vrot.lane.b32.xlu0 %v172, 1
        %v216 = vpop.permute.xlu0 %215
        %vm217 = vcmp.gt.s32.totalorder %v203, 0
        %v218 = vsel %vm217, 1, 0
        %v219 = vcvt.s32.f32 %v218
        %v220 = vmul.f32 %v214, %v219
        %v221 = vmul.f32 %v216, %v219
        %v222 = vsub.f32 %v187, %v200
        %v223 = vsub.f32 %v188, %v201
        %v224 = vsub.f32 %v211, %v220
        %v225 = vsub.f32 %v212, %v221
        %v226 = vmul.f32 %v222, %v222
        %v227 = vmul.f32 %v223, %v223
        %v228 = vmul.f32 %v224, %v224
        %v229 = vmul.f32 %v225, %v225
        %v230 = vadd.f32 %v226, %v228
        %v231 = vadd.f32 %v227, %v229
        %v232 = vadd.f32 %v230, 1e-06
        %v233 = vadd.f32 %v231, 1e-06
        %v234 = vrsqrt.pop %v232
        %v235 = vmul.f32 %v232, %v234
        %vm236 = vcmp.eq.f32.partialorder %v232, inf
        %v237 = vsel %vm236, %v232, %v235
        %vm238 = vcmp.eq.f32.partialorder %v232, 0.0
        %v239 = vand.u32 %v232, 2147483648
        %v240 = vsel %vm238, %v239, %v237
        %v241 = vrsqrt.pop %v233
        %v242 = vmul.f32 %v233, %v241
        %vm243 = vcmp.eq.f32.partialorder %v233, inf
        %v244 = vsel %vm243, %v233, %v242
        %vm245 = vcmp.eq.f32.partialorder %v233, 0.0
        %v246 = vand.u32 %v233, 2147483648
        %v247 = vsel %vm245, %v246, %v244
        %248 = vst [vmem:[%s152] sm:$0xff] %v240
        %249 = vst [vmem:[%s152 + $0x8] sm:$0xff] %v247
        %s250 = sand.u32 %s68, 1
        %s251 = scalar_lea.sflag [#allocation4], %s250
        %s252 = sand.u32 %s68, 1
        %s253 = smul.addr %s252, 16
        %s254 = scalar_lea.vmem [#allocation5], %s253
        // Predicated region
        $region29: #{tpu_custom_call.1} parent=23 // pred_check
          %p255 = pneg %p78
        $region30: #{tpu_custom_call.1} parent=23 // pred_check_branch
          %257 = sbr.rel (%p255) target = $region32
        $region31: #{tpu_custom_call.1} parent=23 // pred_region
          %s258 = smul.u32 2, %s23
          %s260 = ssub.s32 256, 256
          %261 = vsyncadd %s251, %s260
          %s262 = smul.addr %s22, 2
          %s263 = sadd.s32 %s258, %s262
          %s264 = smul.addr %s263, 128
          %s265 = scalar_lea.hbm %s1, %s264
          %s266 = sshll.u32 %s254, 4
          %s267 = int_to_ptr.vmem [resolvable:$true] %s266
          %272 = dma.vmem_to_hbm [thread:$0]  %s267, 256, %s265, %s251, 128, 128, 8
        $region32: #{tpu_custom_call.1} parent=23 // pred_fallthru
          _
      $region24: #{tpu_custom_call.1} parent=5 // pred_fallthru
        _
      %p273 = scmp.le.s32.totalorder 2, %s13
      // Predicated region
      $region33: #{tpu_custom_call.1} parent=5 // pred_check
        %p274 = pneg %p273
      $region34: #{tpu_custom_call.1} parent=5 // pred_check_branch
        %276 = sbr.rel (%p274) target = $region36
      $region35: #{tpu_custom_call.1} parent=5 // pred_region
        %s277 = ssub.s32 %s13, 2
        // Predicated region
        $region37: #{tpu_custom_call.1} parent=35 // pred_check
          %p278 = pneg %p84
        $region38: #{tpu_custom_call.1} parent=35 // pred_check_branch
          %280 = sbr.rel (%p278) target = $region40
        $region39: #{tpu_custom_call.1} parent=35 // pred_region
          %s281 = sand.u32 %s69, 1
          %s282 = scalar_lea.sflag [#allocation4], %s281
          %s283 = sand.u32 %s69, 1
          %s284 = smul.addr %s283, 16
          %s285 = scalar_lea.vmem [#allocation5], %s284
          %286 = dma.done %s282, 256
        $region40: #{tpu_custom_call.1} parent=35 // pred_fallthru
          _
      $region36: #{tpu_custom_call.1} parent=5 // pred_fallthru
        _
    $region6: #{tpu_custom_call.1} parent=1 // loop_footer
      %s17 = sadd.s32 1, %s13
    $region7: #{tpu_custom_call.1} parent=1 // loop_footer_branch
      %12 = sbr.rel target = $region3
    $region8: #{tpu_custom_call.1} parent=1 // loop_exit
      _
    %287 = vsyncpa [#allocation3], 1
    %s288 = scalar_lea.sflag [#allocation3], 1
    %289 = vsyncpa %s288, 1
    %290 = vsyncpa [#allocation4], 1
    %s291 = scalar_lea.sflag [#allocation4], 1
    %292 = vsyncpa %s291, 1

</llo_original>
